<compile_context>
chip_gen: v7x
topology: tpu7x:2x2x1
jax: 0.10.0
libtpu: 0.0.40
codegen_flags: <defaults>
</compile_context>

<pallas_src>
import functools
import math

import jax
import jax.numpy as jnp
from jax import lax
from jax.experimental import pallas as pl
from jax.experimental.pallas import tpu as pltpu


_LANES = 128
_SUBLANES = 8
_BLOCK_R = 2048   # sublane rows per DMA tile -> 2048*128*4 B = 1 MiB per input
_SUB_R = 64       # rows per in-register compute sub-slice (8 vregs / temporary)


def _make_kernel(threshold, rows, block_r, sub_r, chunks_per_split, needs_mask):
    n_sub = block_r // sub_r
    groups = sub_r // _SUBLANES

    def fold(q):
        # (sub_r, 128) -> (8, 128): tile-aligned reshape + VALU adds only;
        # the cross-lane reduction is deferred to the tiny wrapper reduce.
        if groups == 1:
            return q
        return jnp.sum(q.reshape(groups, _SUBLANES, _LANES), axis=0)

    def kernel(x_ref, t_ref, out_ref):
        c = pl.program_id(1)
        j = pl.program_id(2)

        @pl.when(j == 0)
        def _():
            out_ref[...] = jnp.zeros_like(out_ref)

        def body(i, carry):
            a_int, a_pred, a_mt, a_abs, a_bce = carry
            start = i * sub_r
            base = start if isinstance(start, int) else pl.multiple_of(start, sub_r)

            x = x_ref[0, pl.ds(base, sub_r), :].astype(jnp.float32)
            t = t_ref[0, pl.ds(base, sub_r), :].astype(jnp.float32)

            if needs_mask:
                # Ragged tail: rows past the real array hold unspecified data.
                # Force (x, t) -> (0, 0) there BEFORE the log so every term,
                # including BCE (-log(1-0) = 0), contributes exactly zero.
                row0 = (c * chunks_per_split + j) * block_r + base
                rid = row0 + lax.broadcasted_iota(jnp.int32, (sub_r, _LANES), 0)
                valid = rid < rows
                x = jnp.where(valid, x, 0.0)
                t = jnp.where(valid, t, 0.0)

            mt = t > 0.5  # boolean; cast to f32 only where required
            # Single-log BCE: mt in {0,1} and the -100 clamp applies per branch,
            # so this equals -(mt*max(log x,-100) + (1-mt)*max(log(1-x),-100)).
            bce = -jnp.maximum(jnp.log(jnp.where(mt, x, 1.0 - x)), -100.0)
            diff = ((x > threshold) != (t > threshold)).astype(jnp.float32)

            return (a_int + fold(jnp.where(mt, x, 0.0)),
                    a_pred + fold(x),
                    a_mt + fold(mt.astype(jnp.float32)),
                    a_abs + fold(diff),
                    a_bce + fold(bce))

        zeros = jnp.zeros((_SUBLANES, _LANES), jnp.float32)
        init = (zeros, zeros, zeros, zeros, zeros)
        if n_sub == 1:
            a_int, a_pred, a_mt, a_abs, a_bce = body(0, init)
        else:
            a_int, a_pred, a_mt, a_abs, a_bce = lax.fori_loop(
                0, n_sub, body, init, unroll=min(n_sub, 8))

        # One resident-accumulator update per grid step (output block is
        # constant along the "arbitrary" chunk axis).
        out_ref[0, 0, 0:8, :] += a_int      # sum(inputs * Mt)
        out_ref[0, 0, 8:16, :] += a_pred    # sum(inputs)
        out_ref[0, 0, 16:24, :] += a_mt     # sum(Mt)
        out_ref[0, 0, 24:32, :] += a_abs    # sum(|pt - gt|)
        out_ref[0, 0, 32:40, :] += a_bce    # unweighted BCE sum

    return kernel


@functools.partial(jax.jit, static_argnames=("threshold",))
def weighted_bce_loss(inputs, targets, threshold=0.4):
    """WeightedBCELoss.forward(inputs, targets, threshord).  NCHW in, scalar out."""
    N, C, H, W = inputs.shape
    D = C * H * W
    total = float(N * D)

    rows = -(-D // _LANES)
    x = inputs.reshape(N, D)
    t = targets.reshape(N, D)
    if rows * _LANES != D:
        # TODO(synk): lane-ragged C*H*W (not a multiple of 128) still costs one
        # HBM pad/copy; a flat-layout kernel would be needed to remove it.
        pad = rows * _LANES - D
        x = jnp.pad(x, ((0, 0), (0, pad)))
        t = jnp.pad(t, ((0, 0), (0, pad)))
    x = x.reshape(N, rows, _LANES)
    t = t.reshape(N, rows, _LANES)

    # Tiling: large DMA tiles, compute sub-sliced in-kernel.
    block_r = min(_BLOCK_R, -(-rows // _SUBLANES) * _SUBLANES)  # multiple of 8
    sub_r = math.gcd(block_r, _SUB_R)                           # multiple of 8, divides block_r
    num_chunks = -(-rows // block_r)
    # v7x: split the reduction across both TensorCores when the batch axis
    # alone could leave one idle; only when the chunk count divides evenly so
    # every block start stays in-bounds.  No-op on v5e/v6e (1 TC).
    core_split = 2 if (num_chunks >= 2 and num_chunks % 2 == 0) else 1
    chunks_per_split = num_chunks // core_split
    needs_mask = (core_split * chunks_per_split * block_r != rows)

    kernel = _make_kernel(float(threshold), rows, block_r, sub_r,
                          chunks_per_split, needs_mask)

    bytes_in = 2 * N * rows * _LANES * inputs.dtype.itemsize
    cost = pl.CostEstimate(
        flops=int(14 * N * rows * _LANES),
        transcendentals=int(N * rows * _LANES),          # one log per element
        bytes_accessed=int(bytes_in + N * core_split * 5 * _SUBLANES * _LANES * 4),
    )

    partials = pl.pallas_call(
        kernel,
        out_shape=jax.ShapeDtypeStruct(
            (N, core_split, 5 * _SUBLANES, _LANES), jnp.float32),
        grid=(N, core_split, chunks_per_split),
        in_specs=[
            pl.BlockSpec((1, block_r, _LANES),
                         lambda n, c, j: (n, c * chunks_per_split + j, 0)),
            pl.BlockSpec((1, block_r, _LANES),
                         lambda n, c, j: (n, c * chunks_per_split + j, 0)),
        ],
        out_specs=pl.BlockSpec((1, 1, 5 * _SUBLANES, _LANES),
                               lambda n, c, j: (n, c, 0, 0)),
        compiler_params=pltpu.CompilerParams(
            dimension_semantics=("parallel", "parallel", "arbitrary"),
            vmem_limit_bytes=48 * 1024 * 1024,
        ),
        cost_estimate=cost,
    )(x, t)

    # Final cross-lane reduce + scalar composition on a tiny tensor.
    sums = partials.reshape(N, core_split, 5, _SUBLANES * _LANES).sum(axis=(1, 3))
    s_int, s_pred, s_mt, s_abs, s_bce = (sums[:, k] for k in range(5))

    # dice_loss(inputs, Mt) with smooth = 0 (matches the PyTorch dice_loss form).
    dice_ratio = s_int / (s_pred + s_mt - s_int)
    loss_dice = 1.0 - jnp.mean(dice_ratio)

    pos_ratio = jnp.sum(s_mt) / total
    neg_ratio = 1.0 - pos_ratio
    weight = neg_ratio / jnp.maximum(pos_ratio, 1e-6)

    loss1 = weight * jnp.sum(s_bce) / total   # nn.BCELoss(weight=weight)(inputs, Mt)
    loss_ou = jnp.sum(s_abs) / N              # sum(|pt - gt|) / batch_size

    return loss1 + 10.0 * loss_dice + 0.2 * loss_ou


def weighted_bce_loss_ref(inputs, targets, threshold=0.4):
    """Pure-JAX reference mirroring the PyTorch module."""
    x = inputs.astype(jnp.float32)
    t = targets.astype(jnp.float32)
    gt = (t > threshold).astype(jnp.float32)
    pt = (x > threshold).astype(jnp.float32)
    mt = (t > 0.5).astype(jnp.float32)

    inter = jnp.sum(x * mt, axis=(1, 2, 3))
    psum = jnp.sum(x, axis=(1, 2, 3))
    tsum = jnp.sum(mt, axis=(1, 2, 3))
    loss_dice = 1.0 - jnp.mean(inter / (psum + tsum - inter))

    pos_ratio = jnp.mean(mt)
    neg_ratio = 1.0 - pos_ratio
    weight = neg_ratio / jnp.maximum(pos_ratio, 1e-6)

    logp = jnp.maximum(jnp.log(x), -100.0)
    log1mp = jnp.maximum(jnp.log(1.0 - x), -100.0)
    loss1 = weight * jnp.mean(-(mt * logp + (1.0 - mt) * log1mp))

    loss_ou = jnp.sum(jnp.abs(pt - gt)) / x.shape[0]
    return loss1 + 10.0 * loss_dice + 0.2 * loss_ou


if __name__ == "__main__":
    key = jax.random.PRNGKey(0)
    k0, k1 = jax.random.split(key)

    N, C, H, W = 2, 4, 16, 16
    # inputs must be probabilities in (0,1) for BCELoss
    inputs = jax.nn.sigmoid(jax.random.normal(k0, (N, C, H, W), jnp.float32))
    # targets: soft masks in (0,1) (thresholded inside the loss)
    targets = jax.random.uniform(k1, (N, C, H, W), jnp.float32)

    loss = weighted_bce_loss(inputs, targets)
    loss = jax.block_until_ready(loss)

    ref = weighted_bce_loss_ref(inputs, targets)
    assert jnp.allclose(loss, ref, rtol=1e-4, atol=1e-4), (loss, ref)

    print("KERNEL_OK")
</pallas_src>

<mosaic_0001>
module attributes {stable_mosaic.version = 11 : i64} {
  func.func @kernel(%arg0: i32, %arg1: i32, %arg2: i32, %arg3: memref<1x8x128xf32, #tpu.memory_space<vmem>>, %arg4: memref<1x8x128xf32, #tpu.memory_space<vmem>>, %arg5: memref<1x1x40x128xf32, #tpu.memory_space<vmem>>) attributes {dimension_semantics = [#tpu.dimension_semantics<parallel>, #tpu.dimension_semantics<parallel>, #tpu.dimension_semantics<arbitrary>], iteration_bounds = array<i64: 2, 1, 1>, scalar_prefetch = 0 : i64, scratch_operands = 0 : i64, tpu.core_type = #tpu.core_type<tc>, window_params = [{transform_indices = @transform_0, window_bounds = array<i64: 1, 8, 128>}, {transform_indices = @transform_1, window_bounds = array<i64: 1, 8, 128>}, {transform_indices = @transform_2, window_bounds = array<i64: 1, 1, 40, 128>}]} {
    %c0_i32 = arith.constant 0 : i32
    %0 = arith.cmpi eq, %arg2, %c0_i32 : i32
    %1 = arith.extui %0 : i1 to i32
    %c0_i32_0 = arith.constant 0 : i32
    %2 = arith.cmpi ne, %1, %c0_i32_0 : i32
    scf.if %2 {
      %cst_49 = arith.constant 0.000000e+00 : f32
      %64 = vector.broadcast %cst_49 : f32 to vector<1x1x40x128xf32>
      %c0_50 = arith.constant 0 : index
      %c0_51 = arith.constant 0 : index
      %c0_52 = arith.constant 0 : index
      %c0_53 = arith.constant 0 : index
      %65 = vector.load %arg5[%c0_50, %c0_51, %c0_52, %c0_53] : memref<1x1x40x128xf32, #tpu.memory_space<vmem>>, vector<1x1x40x128xf32>
      tpu.vector_store %arg5[%c0_50, %c0_51, %c0_52, %c0_53], %64 {strides = array<i32>} : memref<1x1x40x128xf32, #tpu.memory_space<vmem>>, vector<1x1x40x128xf32>,
    } else {
    }
    %cst = arith.constant 0.000000e+00 : f32
    %3 = vector.broadcast %cst : f32 to vector<8x128xf32>
    %c0 = arith.constant 0 : index
    %c0_1 = arith.constant 0 : index
    %c0_2 = arith.constant 0 : index
    %4 = vector.load %arg3[%c0, %c0_1, %c0_2] : memref<1x8x128xf32, #tpu.memory_space<vmem>>, vector<1x8x128xf32>
    %5 = vector.shape_cast %4 : vector<1x8x128xf32> to vector<8x128xf32>
    %c0_3 = arith.constant 0 : index
    %c0_4 = arith.constant 0 : index
    %c0_5 = arith.constant 0 : index
    %6 = vector.load %arg4[%c0_3, %c0_4, %c0_5] : memref<1x8x128xf32, #tpu.memory_space<vmem>>, vector<1x8x128xf32>
    %7 = vector.shape_cast %6 : vector<1x8x128xf32> to vector<8x128xf32>
    %cst_6 = arith.constant 5.000000e-01 : f32
    %8 = vector.broadcast %cst_6 : f32 to vector<8x128xf32>
    %9 = arith.cmpf ogt, %7, %8 : vector<8x128xf32>
    %cst_7 = arith.constant 1.000000e+00 : f32
    %10 = vector.broadcast %cst_7 : f32 to vector<8x128xf32>
    %11 = arith.subf %10, %5 : vector<8x128xf32>
    %12 = arith.select %9, %5, %11 : vector<8x128xi1>, vector<8x128xf32>
    %13 = math.log %12 : vector<8x128xf32>
    %cst_8 = arith.constant -1.000000e+02 : f32
    %14 = vector.broadcast %cst_8 : f32 to vector<8x128xf32>
    %15 = arith.maximumf %13, %14 : vector<8x128xf32>
    %cst_9 = arith.constant 0.000000e+00 : f32
    %16 = vector.broadcast %cst_9 : f32 to vector<8x128xf32>
    %17 = arith.subf %16, %15 : vector<8x128xf32>
    %cst_10 = arith.constant 4.000000e-01 : f32
    %18 = vector.broadcast %cst_10 : f32 to vector<8x128xf32>
    %19 = arith.cmpf ogt, %5, %18 : vector<8x128xf32>
    %cst_11 = arith.constant 4.000000e-01 : f32
    %20 = vector.broadcast %cst_11 : f32 to vector<8x128xf32>
    %21 = arith.cmpf ogt, %7, %20 : vector<8x128xf32>
    %22 = arith.xori %19, %21 : vector<8x128xi1>
    %23 = arith.extui %22 : vector<8x128xi1> to vector<8x128xi32>
    %24 = arith.sitofp %23 : vector<8x128xi32> to vector<8x128xf32>
    %cst_12 = arith.constant 0.000000e+00 : f32
    %25 = vector.broadcast %cst_12 : f32 to vector<8x128xf32>
    %26 = arith.select %9, %5, %25 : vector<8x128xi1>, vector<8x128xf32>
    %27 = arith.addf %3, %26 : vector<8x128xf32>
    %28 = arith.addf %3, %5 : vector<8x128xf32>
    %29 = arith.extui %9 : vector<8x128xi1> to vector<8x128xi32>
    %30 = arith.sitofp %29 : vector<8x128xi32> to vector<8x128xf32>
    %31 = arith.addf %3, %30 : vector<8x128xf32>
    %32 = arith.addf %3, %24 : vector<8x128xf32>
    %33 = arith.addf %3, %17 : vector<8x128xf32>
    %c0_13 = arith.constant 0 : index
    %c0_14 = arith.constant 0 : index
    %c0_15 = arith.constant 0 : index
    %c0_16 = arith.constant 0 : index
    %34 = vector.load %arg5[%c0_13, %c0_14, %c0_15, %c0_16] : memref<1x1x40x128xf32, #tpu.memory_space<vmem>>, vector<1x1x8x128xf32>
    %35 = vector.shape_cast %34 : vector<1x1x8x128xf32> to vector<8x128xf32>
    %36 = arith.addf %35, %27 : vector<8x128xf32>
    %c0_17 = arith.constant 0 : index
    %c0_18 = arith.constant 0 : index
    %c0_19 = arith.constant 0 : index
    %c0_20 = arith.constant 0 : index
    %37 = vector.load %arg5[%c0_17, %c0_18, %c0_19, %c0_20] : memref<1x1x40x128xf32, #tpu.memory_space<vmem>>, vector<1x1x8x128xf32>
    %38 = vector.shape_cast %37 : vector<1x1x8x128xf32> to vector<8x128xf32>
    %39 = vector.shape_cast %36 : vector<8x128xf32> to vector<1x1x8x128xf32>
    tpu.vector_store %arg5[%c0_17, %c0_18, %c0_19, %c0_20], %39 {strides = array<i32>} : memref<1x1x40x128xf32, #tpu.memory_space<vmem>>, vector<1x1x8x128xf32>,
    %c0_21 = arith.constant 0 : index
    %c0_22 = arith.constant 0 : index
    %c8 = arith.constant 8 : index
    %c0_23 = arith.constant 0 : index
    %40 = vector.load %arg5[%c0_21, %c0_22, %c8, %c0_23] : memref<1x1x40x128xf32, #tpu.memory_space<vmem>>, vector<1x1x8x128xf32>
    %41 = vector.shape_cast %40 : vector<1x1x8x128xf32> to vector<8x128xf32>
    %42 = arith.addf %41, %28 : vector<8x128xf32>
    %c0_24 = arith.constant 0 : index
    %c0_25 = arith.constant 0 : index
    %c8_26 = arith.constant 8 : index
    %c0_27 = arith.constant 0 : index
    %43 = vector.load %arg5[%c0_24, %c0_25, %c8_26, %c0_27] : memref<1x1x40x128xf32, #tpu.memory_space<vmem>>, vector<1x1x8x128xf32>
    %44 = vector.shape_cast %43 : vector<1x1x8x128xf32> to vector<8x128xf32>
    %45 = vector.shape_cast %42 : vector<8x128xf32> to vector<1x1x8x128xf32>
    tpu.vector_store %arg5[%c0_24, %c0_25, %c8_26, %c0_27], %45 {strides = array<i32>} : memref<1x1x40x128xf32, #tpu.memory_space<vmem>>, vector<1x1x8x128xf32>,
    %c0_28 = arith.constant 0 : index
    %c0_29 = arith.constant 0 : index
    %c16 = arith.constant 16 : index
    %c0_30 = arith.constant 0 : index
    %46 = vector.load %arg5[%c0_28, %c0_29, %c16, %c0_30] : memref<1x1x40x128xf32, #tpu.memory_space<vmem>>, vector<1x1x8x128xf32>
    %47 = vector.shape_cast %46 : vector<1x1x8x128xf32> to vector<8x128xf32>
    %48 = arith.addf %47, %31 : vector<8x128xf32>
    %c0_31 = arith.constant 0 : index
    %c0_32 = arith.constant 0 : index
    %c16_33 = arith.constant 16 : index
    %c0_34 = arith.constant 0 : index
    %49 = vector.load %arg5[%c0_31, %c0_32, %c16_33, %c0_34] : memref<1x1x40x128xf32, #tpu.memory_space<vmem>>, vector<1x1x8x128xf32>
    %50 = vector.shape_cast %49 : vector<1x1x8x128xf32> to vector<8x128xf32>
    %51 = vector.shape_cast %48 : vector<8x128xf32> to vector<1x1x8x128xf32>
    tpu.vector_store %arg5[%c0_31, %c0_32, %c16_33, %c0_34], %51 {strides = array<i32>} : memref<1x1x40x128xf32, #tpu.memory_space<vmem>>, vector<1x1x8x128xf32>,
    %c0_35 = arith.constant 0 : index
    %c0_36 = arith.constant 0 : index
    %c24 = arith.constant 24 : index
    %c0_37 = arith.constant 0 : index
    %52 = vector.load %arg5[%c0_35, %c0_36, %c24, %c0_37] : memref<1x1x40x128xf32, #tpu.memory_space<vmem>>, vector<1x1x8x128xf32>
    %53 = vector.shape_cast %52 : vector<1x1x8x128xf32> to vector<8x128xf32>
    %54 = arith.addf %53, %32 : vector<8x128xf32>
    %c0_38 = arith.constant 0 : index
    %c0_39 = arith.constant 0 : index
    %c24_40 = arith.constant 24 : index
    %c0_41 = arith.constant 0 : index
    %55 = vector.load %arg5[%c0_38, %c0_39, %c24_40, %c0_41] : memref<1x1x40x128xf32, #tpu.memory_space<vmem>>, vector<1x1x8x128xf32>
    %56 = vector.shape_cast %55 : vector<1x1x8x128xf32> to vector<8x128xf32>
    %57 = vector.shape_cast %54 : vector<8x128xf32> to vector<1x1x8x128xf32>
    tpu.vector_store %arg5[%c0_38, %c0_39, %c24_40, %c0_41], %57 {strides = array<i32>} : memref<1x1x40x128xf32, #tpu.memory_space<vmem>>, vector<1x1x8x128xf32>,
    %c0_42 = arith.constant 0 : index
    %c0_43 = arith.constant 0 : index
    %c32 = arith.constant 32 : index
    %c0_44 = arith.constant 0 : index
    %58 = vector.load %arg5[%c0_42, %c0_43, %c32, %c0_44] : memref<1x1x40x128xf32, #tpu.memory_space<vmem>>, vector<1x1x8x128xf32>
    %59 = vector.shape_cast %58 : vector<1x1x8x128xf32> to vector<8x128xf32>
    %60 = arith.addf %59, %33 : vector<8x128xf32>
    %c0_45 = arith.constant 0 : index
    %c0_46 = arith.constant 0 : index
    %c32_47 = arith.constant 32 : index
    %c0_48 = arith.constant 0 : index
    %61 = vector.load %arg5[%c0_45, %c0_46, %c32_47, %c0_48] : memref<1x1x40x128xf32, #tpu.memory_space<vmem>>, vector<1x1x8x128xf32>
    %62 = vector.shape_cast %61 : vector<1x1x8x128xf32> to vector<8x128xf32>
    %63 = vector.shape_cast %60 : vector<8x128xf32> to vector<1x1x8x128xf32>
    tpu.vector_store %arg5[%c0_45, %c0_46, %c32_47, %c0_48], %63 {strides = array<i32>} : memref<1x1x40x128xf32, #tpu.memory_space<vmem>>, vector<1x1x8x128xf32>,
    return
  }
  func.func @transform_0(%arg0: i32, %arg1: i32, %arg2: i32) -> (i32, i32, i32) {
    %c1_i32 = arith.constant 1 : i32
    %0 = arith.muli %arg1, %c1_i32 : i32
    %1 = arith.addi %0, %arg2 : i32
    %c0_i32 = arith.constant 0 : i32
    %c0_i32_0 = arith.constant 0 : i32
    return %arg0, %1, %c0_i32 : i32, i32, i32
  }
  func.func @transform_1(%arg0: i32, %arg1: i32, %arg2: i32) -> (i32, i32, i32) {
    %c1_i32 = arith.constant 1 : i32
    %0 = arith.muli %arg1, %c1_i32 : i32
    %1 = arith.addi %0, %arg2 : i32
    %c0_i32 = arith.constant 0 : i32
    %c0_i32_0 = arith.constant 0 : i32
    return %arg0, %1, %c0_i32 : i32, i32, i32
  }
  func.func @transform_2(%arg0: i32, %arg1: i32, %arg2: i32) -> (i32, i32, i32, i32) {
    %c0_i32 = arith.constant 0 : i32
    %c0_i32_0 = arith.constant 0 : i32
    %c0_i32_1 = arith.constant 0 : i32
    return %arg0, %arg1, %c0_i32, %c0_i32_0 : i32, i32, i32, i32
  }
}

</mosaic_0001>

<llo_original>
// kernel: weighted_bce_loss.1
$region0: #{weighted_bce_loss.1}
  #allocation0 [shape = 'u32[]', space=smem, size = 0x4, offset = 0x4, fixed_abs, tag = 'smem constant byte address 0x4 - core index']
  #allocation1 [shape = 'u32[144,128]{1,0:T(1,128)}', space=vmem, size = 0x12000, scoped, tag = 'internal scratch']
  %s0 = inlined_call_operand.vmem [shape: f32[2,8,128], index: 0, kind: input, shape index: {}]
  %s1 = inlined_call_operand.vmem [shape: f32[2,8,128], index: 1, kind: input, shape index: {}]
  %s2 = inlined_call_operand.vmem [shape: f32[2,1,40,128], index: 2, kind: output, shape index: {}]
  %s3 = sld [smem:[#allocation0]]
  $region45: #{weighted_bce_loss.1} parent=0
    _
  %s5 = ssub.s32 1, %s3
  %s6 = scalar_select 0, %s5, %s3
  loop: start=0, step=1, limit=4
  $region2: #{weighted_bce_loss.1} parent=0 // loop_pre_header
    _
  $region3: #{weighted_bce_loss.1} parent=0 // loop_header
    %s8 = sphi 0, %s12
    %p9 = scmp.ge.s32.totalorder %s8, 4
    %s15 = sphi 0, %s34
    %s16 = sphi 0, %s30
    %s17 = sphi 0, %s26
    %s18 = sphi 0, %s15
    %s19 = sphi 0, %s16
    %s20 = sphi 0, %s17
    %s21 = sphi 0, %s18
    %s22 = sphi 0, %s19
    %s23 = sphi 0, %s20
    %s41 = sphi 0, %s43
    %s44 = sphi 0, %s41
    %s45 = sphi 0, %s44
    %s61 = sphi 0, %s45
    %s71 = sphi 0, %s73
    %s74 = sphi 0, %s71
    %s75 = sphi 0, %s74
    %s91 = sphi 0, %s75
    %s99 = sphi 0, %s101
    %s102 = sphi 0, %s99
    %s103 = sphi 0, %s102
    %s119 = sphi 0, %s103
  $region4: #{weighted_bce_loss.1} parent=0 // loop_header_branch
    %11 = sbr.rel (%p9) target = $region8
  $region5: #{weighted_bce_loss.1} parent=0 // loop_body
    %s13 = ssub.s32 %s8, 1
    %s14 = ssub.s32 %s8, 2
    %s24 = sadd.s32 1, %s17
    %p25 = scmp.ge.s32.totalorder %s24, 1
    %s26 = scalar_select %p25, 0, %s24
    %s27 = sadd.s32 1, %s16
    %s28 = scalar_select %p25, %s27, %s16
    %p29 = scmp.ge.s32.totalorder %s28, 1
    %s30 = scalar_select %p29, 0, %s28
    %s31 = sadd.s32 1, %s15
    %s32 = scalar_select %p29, %s31, %s15
    %p33 = scmp.ge.s32.totalorder %s32, 2
    %s34 = scalar_select %p33, 0, %s32
    %s35 = sadd.s32 %s16, %s17
    %s36 = sadd.s32 %s30, %s26
    %s37 = ssub.s32 %s15, %s34
    %s38 = ssub.s32 %s35, %s36
    %s39 = sor.u32 %s37, %s38
    %p40 = scmp.eq.s32.totalorder %s39, 0
    %s42 = sadd.s32 %s41, 1
    %s43 = scalar_select %p40, %s41, %s42
    %p46 = pneg %p40
    %p47 = scmp.eq.s32.totalorder %s8, 1
    %p48 = por %p46, %p47
    %p49 = scmp.ne.s32.totalorder %s41, %s44
    %p50 = scmp.eq.s32.totalorder %s8, 0
    %p51 = por %p49, %p50
    %p52 = scmp.ne.s32.totalorder %s41, %s44
    %p53 = scmp.eq.s32.totalorder %s13, 1
    %p54 = por %p52, %p53
    %p55 = scmp.ne.s32.totalorder %s44, %s45
    %p56 = scmp.eq.s32.totalorder %s13, 0
    %p57 = por %p55, %p56
    %p58 = scmp.ne.s32.totalorder %s44, %s45
    %p59 = scmp.eq.s32.totalorder %s14, 1
    %p60 = por %p58, %p59
    %p62 = scmp.ne.s32.totalorder %s45, %s61
    %p63 = scmp.eq.s32.totalorder %s14, 0
    %p64 = por %p62, %p63
    %s65 = sadd.s32 %s16, %s17
    %s66 = sadd.s32 %s30, %s26
    %s67 = ssub.s32 %s15, %s34
    %s68 = ssub.s32 %s65, %s66
    %s69 = sor.u32 %s67, %s68
    %p70 = scmp.eq.s32.totalorder %s69, 0
    %s72 = sadd.s32 %s71, 1
    %s73 = scalar_select %p70, %s71, %s72
    %p76 = pneg %p70
    %p77 = scmp.eq.s32.totalorder %s8, 1
    %p78 = por %p76, %p77
    %p79 = scmp.ne.s32.totalorder %s71, %s74
    %p80 = scmp.eq.s32.totalorder %s8, 0
    %p81 = por %p79, %p80
    %p82 = scmp.ne.s32.totalorder %s71, %s74
    %p83 = scmp.eq.s32.totalorder %s13, 1
    %p84 = por %p82, %p83
    %p85 = scmp.ne.s32.totalorder %s74, %s75
    %p86 = scmp.eq.s32.totalorder %s13, 0
    %p87 = por %p85, %p86
    %p88 = scmp.ne.s32.totalorder %s74, %s75
    %p89 = scmp.eq.s32.totalorder %s14, 1
    %p90 = por %p88, %p89
    %p92 = scmp.ne.s32.totalorder %s75, %s91
    %p93 = scmp.eq.s32.totalorder %s14, 0
    %p94 = por %p92, %p93
    %s95 = ssub.s32 %s15, %s34
    %s96 = ssub.s32 %s16, %s30
    %s97 = sor.u32 %s95, %s96
    %p98 = scmp.eq.s32.totalorder %s97, 0
    %s100 = sadd.s32 %s99, 1
    %s101 = scalar_select %p98, %s99, %s100
    %p104 = pneg %p98
    %p105 = scmp.eq.s32.totalorder %s8, 1
    %p106 = por %p104, %p105
    %p107 = scmp.ne.s32.totalorder %s99, %s102
    %p108 = scmp.eq.s32.totalorder %s8, 0
    %p109 = por %p107, %p108
    %p110 = scmp.ne.s32.totalorder %s99, %s102
    %p111 = scmp.eq.s32.totalorder %s13, 1
    %p112 = por %p110, %p111
    %p113 = scmp.ne.s32.totalorder %s102, %s103
    %p114 = scmp.eq.s32.totalorder %s13, 0
    %p115 = por %p113, %p114
    %p116 = scmp.ne.s32.totalorder %s102, %s103
    %p117 = scmp.eq.s32.totalorder %s14, 1
    %p118 = por %p116, %p117
    %p120 = scmp.ne.s32.totalorder %s103, %s119
    %p121 = scmp.eq.s32.totalorder %s14, 0
    %p122 = por %p120, %p121
    %p123 = scmp.le.s32.totalorder 1, %s8
    %p124 = scmp.lt.s32.totalorder %s8, 3
    %p125 = pnand %p123, %p124
    %p126 = pneg %p125
    // Predicated region
    $region9: #{weighted_bce_loss.1} parent=5 // pred_check
      _
    $region10: #{weighted_bce_loss.1} parent=5 // pred_check_branch
      %128 = sbr.rel (%p125) target = $region12
    $region11: #{weighted_bce_loss.1} parent=5 // pred_region
      %s129 = ssub.s32 %s8, 1
    $region12: #{weighted_bce_loss.1} parent=5 // pred_fallthru
      _
    %p130 = scmp.lt.s32.totalorder %s8, 2
    // Predicated region
    $region13: #{weighted_bce_loss.1} parent=5 // pred_check
      %p131 = pneg %p130
    $region14: #{weighted_bce_loss.1} parent=5 // pred_check_branch
      %133 = sbr.rel (%p131) target = $region16
    $region15: #{weighted_bce_loss.1} parent=5 // pred_region
      // Predicated region
      $region17: #{weighted_bce_loss.1} parent=15 // pred_check
        %p134 = pneg %p51
      $region18: #{weighted_bce_loss.1} parent=15 // pred_check_branch
        %136 = sbr.rel (%p134) target = $region20
      $region19: #{weighted_bce_loss.1} parent=15 // pred_region
        %s137 = sadd.s32 %s16, %s17
        %p138 = scmp.lt.s32.totalorder %s15, 1
        %s139 = scalar_select %p138, %s15, 1
        %p140 = scmp.lt.s32.totalorder %s137, 0
        %s141 = scalar_select %p140, %s137, 0
        %s142 = sadd.s32 %s141, %s139
        %s143 = smul.addr %s142, 8
        %s144 = scalar_lea.vmem %s0, %s143
        %s145 = sadd.s32 %s16, %s17
      $region20: #{weighted_bce_loss.1} parent=15 // pred_fallthru
        _
      // Predicated region
      $region21: #{weighted_bce_loss.1} parent=15 // pred_check
        %p146 = pneg %p81
      $region22: #{weighted_bce_loss.1} parent=15 // pred_check_branch
        %148 = sbr.rel (%p146) target = $region24
      $region23: #{weighted_bce_loss.1} parent=15 // pred_region
        %s149 = sadd.s32 %s16, %s17
        %p150 = scmp.lt.s32.totalorder %s15, 1
        %s151 = scalar_select %p150, %s15, 1
        %p152 = scmp.lt.s32.totalorder %s149, 0
        %s153 = scalar_select %p152, %s149, 0
        %s154 = sadd.s32 %s153, %s151
        %s155 = smul.addr %s154, 8
        %s156 = scalar_lea.vmem %s1, %s155
        %s157 = sadd.s32 %s16, %s17
      $region24: #{weighted_bce_loss.1} parent=15 // pred_fallthru
        _
    $region16: #{weighted_bce_loss.1} parent=5 // pred_fallthru
      _
    %p158 = scmp.le.s32.totalorder 1, %s8
    %p159 = scmp.lt.s32.totalorder %s8, 3
    %p160 = pnand %p158, %p159
    %p161 = pneg %p160
    // Predicated region
    $region25: #{weighted_bce_loss.1} parent=5 // pred_check
      _
    $region26: #{weighted_bce_loss.1} parent=5 // pred_check_branch
      %163 = sbr.rel (%p160) target = $region28
    $region27: #{weighted_bce_loss.1} parent=5 // pred_region
      %s164 = ssub.s32 %s8, 1
      %s165 = sadd.s32 %s19, %s20
      %p166 = scmp.lt.s32.totalorder %s18, 1
      %s167 = scalar_select %p166, %s18, 1
      %p168 = scmp.lt.s32.totalorder %s165, 0
      %s169 = scalar_select %p168, %s165, 0
      %s170 = sadd.s32 %s169, %s167
      %s171 = smul.addr %s170, 8
      %s172 = scalar_lea.vmem %s0, %s171
      %p173 = pneg %p57
      %p174 = pneg %p54
      %s175 = sadd.s32 %s19, %s20
      %p176 = scmp.lt.s32.totalorder %s18, 1
      %s177 = scalar_select %p176, %s18, 1
      %p178 = scmp.lt.s32.totalorder %s175, 0
      %s179 = scalar_select %p178, %s175, 0
      %s180 = sadd.s32 %s179, %s177
      %s181 = smul.addr %s180, 8
      %s182 = scalar_lea.vmem %s1, %s181
      %p183 = pneg %p87
      %p184 = pneg %p84
      %p185 = pneg %p115
      %p186 = pneg %p112
      %p187 = scmp.lt.s32.totalorder %s18, 1
      %s188 = scalar_select %p187, %s18, 1
      %p189 = scmp.lt.s32.totalorder %s19, 0
      %s190 = scalar_select %p189, %s19, 0
      %s191 = smul.addr %s190, 5
      %s192 = smul.addr %s188, 5
      %s193 = sadd.s32 %s191, %s192
      %s194 = smul.addr %s193, 8
      %s195 = scalar_lea.vmem %s2, %s194
      %s196 = sadd.s32 %s19, %s20
      %p197 = scmp.lt.s32.totalorder %s18, 1
      %s198 = scalar_select %p197, %s18, 1
      %p199 = scmp.lt.s32.totalorder %s196, 0
      %s200 = scalar_select %p199, %s196, 0
      %s201 = sadd.s32 %s200, %s198
      %s202 = smul.addr %s201, 8
      %s203 = scalar_lea.vmem %s0, %s202
      %s204 = sadd.s32 %s19, %s20
      %s205 = sadd.s32 %s19, %s20
      %p206 = scmp.lt.s32.totalorder %s18, 1
      %s207 = scalar_select %p206, %s18, 1
      %p208 = scmp.lt.s32.totalorder %s205, 0
      %s209 = scalar_select %p208, %s205, 0
      %s210 = sadd.s32 %s209, %s207
      %s211 = smul.addr %s210, 8
      %s212 = scalar_lea.vmem %s1, %s211
      %s213 = sadd.s32 %s19, %s20
      %p214 = scmp.lt.s32.totalorder %s18, 1
      %s215 = scalar_select %p214, %s18, 1
      %p216 = scmp.lt.s32.totalorder %s19, 0
      %s217 = scalar_select %p216, %s19, 0
      %s218 = smul.addr %s217, 5
      %s219 = smul.addr %s215, 5
      %s220 = sadd.s32 %s218, %s219
      %s221 = smul.addr %s220, 8
      %s222 = scalar_lea.vmem %s2, %s221
      %p223 = scmp.eq.s32.totalorder %s20, 0
      // Predicated region
      $region29: #{weighted_bce_loss.1} parent=27 // pred_check
        %p224 = pneg %p223
      $region30: #{weighted_bce_loss.1} parent=27 // pred_check_branch
        %226 = sbr.rel (%p224) target = $region32
      $region31: #{weighted_bce_loss.1} parent=27 // pred_region
        %227 = vst [vmem:[%s222] sm:$0xff] 0.0
        %228 = vst [vmem:[%s222 + $0x8] sm:$0xff] 0.0
        %229 = vst [vmem:[%s222 + $0x10] sm:$0xff] 0.0
        %230 = vst [vmem:[%s222 + $0x18] sm:$0xff] 0.0
        %231 = vst [vmem:[%s222 + $0x20] sm:$0xff] 0.0
      $region32: #{weighted_bce_loss.1} parent=27 // pred_fallthru
        _
      %v232 = vld [vmem:[%s203] sm:$0xff]
      %v233 = vld [vmem:[%s212] sm:$0xff]
      %vm234 = vcmp.gt.f32.partialorder %v233, 0.5
      %v235 = vsub.f32 1.0, %v232
      %v236 = vsel %vm234, %v232, %v235
      %v237 = vlog2.pop %v236
      %v238 = vmul.f32 %v237, 0.6931472
      %v239 = vmax.f32 %v238, -100.0
      %v240 = vsub.f32 0.0, %v239
      %vm241 = vcmp.gt.f32.partialorder %v232, 0.4
      %vm242 = vcmp.gt.f32.partialorder %v233, 0.4
      %vm243 = vmxor %vm241, %vm242
      %v244 = vsel %vm243, 1, 0
      %v245 = vcvt.s32.f32 %v244
      %v246 = vsel %vm234, %v232, 0.0
      %v247 = vadd.f32 %v246, 0.0
      %v248 = vadd.f32 %v232, 0.0
      %v249 = vsel %vm234, 1, 0
      %v250 = vcvt.s32.f32 %v249
      %v251 = vadd.f32 %v250, 0.0
      %v252 = vadd.f32 %v245, 0.0
      %v253 = vadd.f32 %v240, 0.0
      %v254 = vld [vmem:[%s222] sm:$0xff]
      %v255 = vadd.f32 %v254, %v247
      %256 = vst [vmem:[%s222] sm:$0xff] %v255
      %v257 = vld [vmem:[%s222 + $0x8] sm:$0xff]
      %v258 = vadd.f32 %v257, %v248
      %259 = vst [vmem:[%s222 + $0x8] sm:$0xff] %v258
      %v260 = vld [vmem:[%s222 + $0x10] sm:$0xff]
      %v261 = vadd.f32 %v260, %v251
      %262 = vst [vmem:[%s222 + $0x10] sm:$0xff] %v261
      %v263 = vld [vmem:[%s222 + $0x18] sm:$0xff]
      %v264 = vadd.f32 %v263, %v252
      %265 = vst [vmem:[%s222 + $0x18] sm:$0xff] %v264
      %v266 = vld [vmem:[%s222 + $0x20] sm:$0xff]
      %v267 = vadd.f32 %v266, %v253
      %268 = vst [vmem:[%s222 + $0x20] sm:$0xff] %v267
      %p269 = scmp.lt.s32.totalorder %s18, 1
      %s270 = scalar_select %p269, %s18, 1
      %p271 = scmp.lt.s32.totalorder %s19, 0
      %s272 = scalar_select %p271, %s19, 0
      %s273 = smul.addr %s272, 5
      %s274 = smul.addr %s270, 5
      %s275 = sadd.s32 %s273, %s274
      %s276 = smul.addr %s275, 8
      %s277 = scalar_lea.vmem %s2, %s276
      // Predicated region
      $region33: #{weighted_bce_loss.1} parent=27 // pred_check
        %p278 = pneg %p112
      $region34: #{weighted_bce_loss.1} parent=27 // pred_check_branch
        %280 = sbr.rel (%p278) target = $region36
      $region35: #{weighted_bce_loss.1} parent=27 // pred_region
        _
      $region36: #{weighted_bce_loss.1} parent=27 // pred_fallthru
        _
    $region28: #{weighted_bce_loss.1} parent=5 // pred_fallthru
      _
    %p281 = scmp.le.s32.totalorder 2, %s8
    // Predicated region
    $region37: #{weighted_bce_loss.1} parent=5 // pred_check
      %p282 = pneg %p281
    $region38: #{weighted_bce_loss.1} parent=5 // pred_check_branch
      %284 = sbr.rel (%p282) target = $region40
    $region39: #{weighted_bce_loss.1} parent=5 // pred_region
      %s285 = ssub.s32 %s8, 2
      // Predicated region
      $region41: #{weighted_bce_loss.1} parent=39 // pred_check
        %p286 = pneg %p118
      $region42: #{weighted_bce_loss.1} parent=39 // pred_check_branch
        %288 = sbr.rel (%p286) target = $region44
      $region43: #{weighted_bce_loss.1} parent=39 // pred_region
        %p289 = scmp.lt.s32.totalorder %s21, 1
        %s290 = scalar_select %p289, %s21, 1
        %p291 = scmp.lt.s32.totalorder %s22, 0
        %s292 = scalar_select %p291, %s22, 0
        %s293 = smul.addr %s292, 5
        %s294 = smul.addr %s290, 5
        %s295 = sadd.s32 %s293, %s294
        %s296 = smul.addr %s295, 8
        %s297 = scalar_lea.vmem %s2, %s296
      $region44: #{weighted_bce_loss.1} parent=39 // pred_fallthru
        _
    $region40: #{weighted_bce_loss.1} parent=5 // pred_fallthru
      _
  $region6: #{weighted_bce_loss.1} parent=0 // loop_footer
    %s12 = sadd.s32 1, %s8
  $region7: #{weighted_bce_loss.1} parent=0 // loop_footer_branch
    %7 = sbr.rel target = $region3
  $region8: #{weighted_bce_loss.1} parent=0 // loop_exit
    _

</llo_original>
